<compile_context>
chip_gen: v5e
topology: v5e:2x2
jax: 0.10.0
libtpu: 0.0.40
codegen_flags: <defaults>
</compile_context>

<pallas_src>
import functools

import jax
import jax.numpy as jnp
from jax.experimental import pallas as pl
from jax.experimental.pallas import tpu as pltpu


def _round_up(a, b):
    return (a + b - 1) // b * b


def _vmem_capacity_bytes():
    try:
        info = pltpu.get_tpu_info()
        cap = getattr(info, "vmem_capacity_bytes", None)
        if cap:
            return int(cap)
    except Exception:
        pass
    return 64 * 1024 * 1024  # conservative fallback (v7x per-TensorCore VMEM)


_VMEM_CAP = _vmem_capacity_bytes()
_VMEM_LIMIT = int(_VMEM_CAP * 0.85)   # scoped limit handed to Mosaic (headroom kept)
_TILE_BUDGET = int(_VMEM_CAP * 0.70)  # budget for our own (double-buffered) tiles


def _choose_tiles(M, Hp, Pp, out_bytes, budget):
    """Pick (tm, tp): tm as large as the roofline wants (<=1024), tp the largest
    128-multiple divisor of Pp that still fits the VMEM budget."""
    Mp128 = _round_up(max(M, 1), 128)
    tm_cap = Mp128
    if Mp128 >= 256:
        # Keep >=2 M tiles so the "parallel" axis can be sharded across cores.
        tm_cap = min(tm_cap, _round_up((Mp128 + 1) // 2, 128))

    npb = Pp // 128
    tp_cands = sorted({Pp // d for d in range(1, npb + 1) if npb % d == 0},
                      reverse=True)

    def est(tm, tp):
        return (2 * tm * Hp * 2            # x tile, bf16, double-buffered
                + 2 * Hp * tp * 2          # w1 tile
                + 2 * tp * Hp * 2          # w2 tile
                + 2 * tm * Hp * out_bytes  # out tile
                + tm * Hp * 4              # f32 accumulator scratch
                + tm * tp * 6              # h (f32) + h (bf16) temporaries
                + tm * Hp * 4              # partial-product temporary
                + 2 * (tp + Hp) * 4)       # bias tiles

    for tm in (1024, 768, 512, 384, 256, 128):
        tm_eff = max(128, min(tm, tm_cap))
        for tp in tp_cands:
            if est(tm_eff, tp) <= budget:
                return tm_eff, tp
    return 128, 128


def _ffn_kernel(x_ref, w1_ref, b1_ref, w2_ref, b2_ref, o_ref, *scratch, nk):
    # x_ref:  (tm, Hp) bf16   w1_ref: (Hp, tp) bf16   b1_ref: (1, tp) f32
    # w2_ref: (tp, Hp) bf16   b2_ref: (1, Hp)  f32    o_ref:  (tm, Hp) out_dtype
    # scratch: () if nk == 1 else (acc_ref,), acc_ref: (tm, Hp) f32
    k = pl.program_id(1)

    # fc_1 tile + bias + relu (f32 accumulation on the MXU).
    h = jnp.dot(x_ref[...], w1_ref[...], preferred_element_type=jnp.float32)
    h = jnp.maximum(h + b1_ref[...], 0.0)

    # fc_2 partial product for this pf_dim (P) tile.
    partial = jnp.dot(h.astype(w2_ref.dtype), w2_ref[...],
                      preferred_element_type=jnp.float32)

    if nk == 1:
        # Single reduction step: no accumulator scratch, write output directly.
        o_ref[...] = (partial + b2_ref[...]).astype(o_ref.dtype)
    else:
        acc_ref = scratch[0]

        @pl.when(k == 0)
        def _():
            acc_ref[...] = partial                       # no zeros-init round trip

        @pl.when(jnp.logical_and(k > 0, k < nk - 1))
        def _():
            acc_ref[...] += partial

        @pl.when(k == nk - 1)
        def _():
            # Fold the last partial + bias straight into the output (no extra
            # accumulator store).
            o_ref[...] = (acc_ref[...] + partial + b2_ref[...]).astype(o_ref.dtype)


@functools.partial(jax.jit, static_argnames=("out_dtype",))
def _ffn_forward(x, w1p, b1p, w2p, b2p, out_dtype):
    B, S, H = x.shape
    Hp, Pp = w1p.shape
    M = B * S
    compute_dtype = w1p.dtype
    out_dtype = jnp.dtype(out_dtype)

    tm, tp = _choose_tiles(M, Hp, Pp, out_dtype.itemsize, _TILE_BUDGET)
    n_m = (M + tm - 1) // tm
    nk = Pp // tp
    Mp = n_m * tm

    # Pad / cast the activations only when actually needed (padding with zeros
    # is exact: relu(0)=0 and zero weight rows/cols contribute nothing).
    x2d = x.reshape(M, H)
    if (Mp - M) or (Hp - H):
        x2d = jnp.pad(x2d, ((0, Mp - M), (0, Hp - H)))
    if x2d.dtype != compute_dtype:
        x2d = x2d.astype(compute_dtype)

    wbytes = w1p.dtype.itemsize
    cost = pl.CostEstimate(
        flops=4 * Mp * Hp * Pp,                            # two matmuls: 2*M*H*P each
        transcendentals=0,
        bytes_accessed=(
            Mp * Hp * compute_dtype.itemsize               # x read
            + n_m * 2 * Hp * Pp * wbytes                   # w1 + w2 re-streamed per M tile
            + n_m * (Pp + nk * Hp) * 4                     # bias streams
            + Mp * Hp * out_dtype.itemsize                 # output write
        ),
    )

    scratch = [] if nk == 1 else [pltpu.VMEM((tm, Hp), jnp.float32)]

    out2d = pl.pallas_call(
        functools.partial(_ffn_kernel, nk=nk),
        out_shape=jax.ShapeDtypeStruct((Mp, Hp), out_dtype),
        grid_spec=pltpu.PrefetchScalarGridSpec(
            num_scalar_prefetch=0,
            grid=(n_m, nk),
            in_specs=[
                pl.BlockSpec((tm, Hp), lambda i, k: (i, 0)),   # x tile
                pl.BlockSpec((Hp, tp), lambda i, k: (0, k)),   # w1 tile
                pl.BlockSpec((1, tp), lambda i, k: (0, k)),    # b1 tile
                pl.BlockSpec((tp, Hp), lambda i, k: (k, 0)),   # w2 tile
                pl.BlockSpec((1, Hp), lambda i, k: (0, 0)),    # b2
            ],
            out_specs=pl.BlockSpec((tm, Hp), lambda i, k: (i, 0)),
            scratch_shapes=scratch,
        ),
        compiler_params=pltpu.CompilerParams(
            dimension_semantics=("parallel", "arbitrary"),
            vmem_limit_bytes=_VMEM_LIMIT,
        ),
        cost_estimate=cost,
    )(x2d, w1p, b1p, w2p, b2p)

    return out2d[:M, :H].reshape(B, S, H)


def prepare_ffn_params(w1, b1, w2, b2, compute_dtype=jnp.bfloat16):
    """One-time weight prep (pad to lane-dense 128 multiples + cast to bf16).

    Weights are layer constants, so this is hoisted out of the per-call
    forward path (do it once at init / parameter load time).
    """
    H, P = w1.shape
    Hp, Pp = _round_up(H, 128), _round_up(P, 128)
    return dict(
        w1=jnp.pad(w1, ((0, Hp - H), (0, Pp - P))).astype(compute_dtype),
        w2=jnp.pad(w2, ((0, Pp - P), (0, Hp - H))).astype(compute_dtype),
        b1=jnp.pad(b1, (0, Pp - P)).reshape(1, Pp).astype(jnp.float32),
        b2=jnp.pad(b2, (0, Hp - H)).reshape(1, Hp).astype(jnp.float32),
    )


def position_wise_feedforward(x, params, out_dtype=None):
    """x: [B, S, hid_dim] -> [B, S, hid_dim]; params from prepare_ffn_params."""
    out_dtype = x.dtype if out_dtype is None else jnp.dtype(out_dtype)
    return _ffn_forward(x, params["w1"], params["b1"], params["w2"], params["b2"],
                        out_dtype=jnp.dtype(out_dtype))


if __name__ == "__main__":
    # Small, deterministic example consistent with the module's forward:
    # x: [batch_size=2, seq_len=8, hid_dim=32], pf_dim=64, dropout (eval) = id.
    B, S, HID, PF = 2, 8, 32, 64
    key = jax.random.PRNGKey(0)
    kx, k1, k2, k3, k4 = jax.random.split(key, 5)

    x = jax.random.normal(kx, (B, S, HID), dtype=jnp.float32)
    # Deterministic synthetic parameters (nn.Linear weights stored as [in, out]).
    w1 = jax.random.normal(k1, (HID, PF), dtype=jnp.float32) * (1.0 / HID) ** 0.5
    b1 = jax.random.normal(k2, (PF,), dtype=jnp.float32) * 0.01
    w2 = jax.random.normal(k3, (PF, HID), dtype=jnp.float32) * (1.0 / PF) ** 0.5
    b2 = jax.random.normal(k4, (HID,), dtype=jnp.float32) * 0.01

    params = prepare_ffn_params(w1, b1, w2, b2)   # hoisted one-time weight prep
    out = position_wise_feedforward(x, params)
    out = jax.block_until_ready(out)
    assert out.shape == (B, S, HID)

    # Reference with matching precision (bf16 matmul operands, f32 accumulate).
    bf = jnp.bfloat16
    h_ref = jnp.maximum(
        jnp.dot(x.astype(bf), w1.astype(bf), preferred_element_type=jnp.float32) + b1,
        0.0,
    )
    ref = (
        jnp.dot(h_ref.astype(bf), w2.astype(bf), preferred_element_type=jnp.float32)
        + b2
    )
    assert jnp.allclose(out, ref, atol=5e-3, rtol=5e-3), float(
        jnp.max(jnp.abs(out - ref))
    )

    # Loose sanity check against the full-f32 reference too.
    ref_f32 = jnp.maximum(x @ w1 + b1, 0.0) @ w2 + b2
    assert jnp.allclose(out, ref_f32, atol=5e-2, rtol=5e-2)

    print("KERNEL_OK")
</pallas_src>

<mosaic_0001>
module attributes {stable_mosaic.version = 11 : i64} {
  func.func @_ffn_kernel(%arg0: i32, %arg1: i32, %arg2: memref<128x128xbf16, #tpu.memory_space<vmem>>, %arg3: memref<128x128xbf16, #tpu.memory_space<vmem>>, %arg4: memref<1x128xf32, #tpu.memory_space<vmem>>, %arg5: memref<128x128xbf16, #tpu.memory_space<vmem>>, %arg6: memref<1x128xf32, #tpu.memory_space<vmem>>, %arg7: memref<128x128xf32, #tpu.memory_space<vmem>>) attributes {dimension_semantics = [#tpu.dimension_semantics<parallel>, #tpu.dimension_semantics<arbitrary>], iteration_bounds = array<i64: 1, 1>, scalar_prefetch = 0 : i64, scratch_operands = 0 : i64, tpu.core_type = #tpu.core_type<tc>, window_params = [{transform_indices = @transform_0, window_bounds = array<i64: 128, 128>}, {transform_indices = @transform_1, window_bounds = array<i64: 128, 128>}, {transform_indices = @transform_2, window_bounds = array<i64: 1, 128>}, {transform_indices = @transform_3, window_bounds = array<i64: 128, 128>}, {pipeline_mode = #tpu.pipeline_mode<synchronous>, transform_indices = @transform_4, window_bounds = array<i64: 1, 128>}, {transform_indices = @transform_5, window_bounds = array<i64: 128, 128>}]} {
    %c0 = arith.constant 0 : index
    %c0_0 = arith.constant 0 : index
    %0 = vector.load %arg2[%c0, %c0_0] : memref<128x128xbf16, #tpu.memory_space<vmem>>, vector<128x128xbf16>
    %c0_1 = arith.constant 0 : index
    %c0_2 = arith.constant 0 : index
    %1 = vector.load %arg3[%c0_1, %c0_2] : memref<128x128xbf16, #tpu.memory_space<vmem>>, vector<128x128xbf16>
    %cst = arith.constant dense<0.000000e+00> : vector<128x128xf32>
    %2 = tpu.matmul %0, %1, %cst {dimension_numbers = #tpu.dot_dimension_numbers<[1], [0], [0], [1], [0, 0, 1, 1], [], []>} : vector<128x128xbf16>, vector<128x128xbf16>, vector<128x128xf32> -> vector<128x128xf32>
    %c0_3 = arith.constant 0 : index
    %c0_4 = arith.constant 0 : index
    %3 = vector.load %arg4[%c0_3, %c0_4] : memref<1x128xf32, #tpu.memory_space<vmem>>, vector<1x128xf32>
    %4 = vector.broadcast %3 : vector<1x128xf32> to vector<128x128xf32>
    %5 = arith.addf %2, %4 : vector<128x128xf32>
    %cst_5 = arith.constant 0.000000e+00 : f32
    %6 = vector.broadcast %cst_5 : f32 to vector<128x128xf32>
    %7 = arith.maximumf %5, %6 : vector<128x128xf32>
    %8 = arith.truncf %7 : vector<128x128xf32> to vector<128x128xbf16>
    %c0_6 = arith.constant 0 : index
    %c0_7 = arith.constant 0 : index
    %9 = vector.load %arg5[%c0_6, %c0_7] : memref<128x128xbf16, #tpu.memory_space<vmem>>, vector<128x128xbf16>
    %cst_8 = arith.constant dense<0.000000e+00> : vector<128x128xf32>
    %10 = tpu.matmul %8, %9, %cst_8 {dimension_numbers = #tpu.dot_dimension_numbers<[1], [0], [0], [1], [0, 0, 1, 1], [], []>} : vector<128x128xbf16>, vector<128x128xbf16>, vector<128x128xf32> -> vector<128x128xf32>
    %c0_9 = arith.constant 0 : index
    %c0_10 = arith.constant 0 : index
    %11 = vector.load %arg6[%c0_9, %c0_10] : memref<1x128xf32, #tpu.memory_space<vmem>>, vector<1x128xf32>
    %12 = vector.broadcast %11 : vector<1x128xf32> to vector<128x128xf32>
    %13 = arith.addf %10, %12 : vector<128x128xf32>
    %c0_11 = arith.constant 0 : index
    %c0_12 = arith.constant 0 : index
    %14 = vector.load %arg7[%c0_11, %c0_12] : memref<128x128xf32, #tpu.memory_space<vmem>>, vector<128x128xf32>
    tpu.vector_store %arg7[%c0_11, %c0_12], %13 {strides = array<i32>} : memref<128x128xf32, #tpu.memory_space<vmem>>, vector<128x128xf32>,
    return
  }
  func.func @transform_0(%arg0: i32, %arg1: i32) -> (i32, i32) {
    %c0_i32 = arith.constant 0 : i32
    %c0_i32_0 = arith.constant 0 : i32
    return %arg0, %c0_i32 : i32, i32
  }
  func.func @transform_1(%arg0: i32, %arg1: i32) -> (i32, i32) {
    %c0_i32 = arith.constant 0 : i32
    %c0_i32_0 = arith.constant 0 : i32
    return %c0_i32, %arg1 : i32, i32
  }
  func.func @transform_2(%arg0: i32, %arg1: i32) -> (i32, i32) {
    %c0_i32 = arith.constant 0 : i32
    %c0_i32_0 = arith.constant 0 : i32
    return %c0_i32, %arg1 : i32, i32
  }
  func.func @transform_3(%arg0: i32, %arg1: i32) -> (i32, i32) {
    %c0_i32 = arith.constant 0 : i32
    %c0_i32_0 = arith.constant 0 : i32
    return %arg1, %c0_i32 : i32, i32
  }
  func.func @transform_4(%arg0: i32, %arg1: i32) -> (i32, i32) {
    %c0_i32 = arith.constant 0 : i32
    %c0_i32_0 = arith.constant 0 : i32
    %c0_i32_1 = arith.constant 0 : i32
    return %c0_i32, %c0_i32_0 : i32, i32
  }
  func.func @transform_5(%arg0: i32, %arg1: i32) -> (i32, i32) {
    %c0_i32 = arith.constant 0 : i32
    %c0_i32_0 = arith.constant 0 : i32
    return %arg0, %c0_i32 : i32, i32
  }
}

</mosaic_0001>

<llo_original>
// kernel: _ffn_forward.1
$region0: #{_ffn_forward.1}
  #allocation0 [shape = 'u32[]', space=smem, size = 0x4, offset = 0x4, fixed_abs, tag = 'smem constant byte address 0x4 - core index']
  #allocation1 [shape = 'u32[72,128]{1,0:T(1,128)}', space=vmem, size = 0x9000, scoped, tag = 'internal scratch']
  %s0 = inlined_call_operand.vmem [shape: bf16[128,128], index: 0, kind: input, shape index: {}]
  %s1 = inlined_call_operand.vmem [shape: bf16[128,128], index: 1, kind: input, shape index: {}]
  %s2 = inlined_call_operand.vmem [shape: f32[1,128], index: 2, kind: input, shape index: {}]
  %s3 = inlined_call_operand.hbm [shape: bf16[128,128], index: 3, kind: input, shape index: {}]
  %s4 = inlined_call_operand.vmem [shape: f32[1,128], index: 4, kind: input, shape index: {}]
  %s5 = inlined_call_operand.vmem [shape: f32[128,128], index: 5, kind: output, shape index: {}]
  %s6 = sld [smem:[#allocation0]]
  $region34: #{_ffn_forward.1} parent=0
    _
  %s8 = ssub.s32 1, %s6
  %s9 = scalar_select 0, %s8, %s6
  $region1: #{_ffn_forward.1} parent=0
    #allocation2 [shape = 'u8[32768]{0}', space=vmem, size = 0x8000, scoped, tag = 'input window, operand 3, single buffered']
    #allocation3 [shape = 's32[1]{0}', space=sflag, size = 0x4, scoped, tag = 'scoped memory for _ffn_forward.1']
    %10 = vsyncpa [#allocation3], 0
    // Predicated region
    $region2: #{_ffn_forward.1} parent=1 // pred_check
      _
    $region3: #{_ffn_forward.1} parent=1 // pred_check_branch
      %12 = sbr.rel (0) target = $region5
    $region4: #{_ffn_forward.1} parent=1 // pred_region
      _
    $region5: #{_ffn_forward.1} parent=1 // pred_fallthru
      _
    // Predicated region
    $region6: #{_ffn_forward.1} parent=1 // pred_check
      _
    $region7: #{_ffn_forward.1} parent=1 // pred_check_branch
      %14 = sbr.rel (0) target = $region9
    $region8: #{_ffn_forward.1} parent=1 // pred_region
      _
    $region9: #{_ffn_forward.1} parent=1 // pred_fallthru
      _
    // Predicated region
    $region10: #{_ffn_forward.1} parent=1 // pred_check
      _
    $region11: #{_ffn_forward.1} parent=1 // pred_check_branch
      %16 = sbr.rel (0) target = $region13
    $region12: #{_ffn_forward.1} parent=1 // pred_region
      _
    $region13: #{_ffn_forward.1} parent=1 // pred_fallthru
      _
    // Predicated region
    $region14: #{_ffn_forward.1} parent=1 // pred_check
      _
    $region15: #{_ffn_forward.1} parent=1 // pred_check_branch
      %18 = sbr.rel (0) target = $region17
    $region16: #{_ffn_forward.1} parent=1 // pred_region
      %20 = vsyncadd [#allocation3], 0
      %s21 = sshll.u32 %s3, 4
      %s22 = int_to_ptr.hbm [resolvable:$true] %s21
      %s23 = sshll.u32 [#allocation2], 4
      %s24 = int_to_ptr.vmem [resolvable:$true] %s23
      %29 = dma.hbm_to_vmem [thread:$0]  %s22, 1024, %s24, [#allocation3], 64, 64, 4
    $region17: #{_ffn_forward.1} parent=1 // pred_fallthru
      _
    // Predicated region
    $region18: #{_ffn_forward.1} parent=1 // pred_check
      _
    $region19: #{_ffn_forward.1} parent=1 // pred_check_branch
      %31 = sbr.rel (0) target = $region21
    $region20: #{_ffn_forward.1} parent=1 // pred_region
      _
    $region21: #{_ffn_forward.1} parent=1 // pred_fallthru
      _
    // Predicated region
    $region22: #{_ffn_forward.1} parent=1 // pred_check
      _
    $region23: #{_ffn_forward.1} parent=1 // pred_check_branch
      %33 = sbr.rel (0) target = $region25
    $region24: #{_ffn_forward.1} parent=1 // pred_region
      %35 = dma.done [#allocation3], 1024
    $region25: #{_ffn_forward.1} parent=1 // pred_fallthru
      _
    %v36 = vld [vmem:[%s0] sm:$0xf]
    %v37 = vld [vmem:[%s0 + $0x4] sm:$0xf]
    %v38 = vld [vmem:[%s0 + $0x8] sm:$0xf]
    %v39 = vld [vmem:[%s0 + $0xc] sm:$0xf]
    %v40 = vld [vmem:[%s0 + $0x10] sm:$0xf]
    %v41 = vld [vmem:[%s0 + $0x14] sm:$0xf]
    %v42 = vld [vmem:[%s0 + $0x18] sm:$0xf]
    %v43 = vld [vmem:[%s0 + $0x1c] sm:$0xf]
    %v44 = vld [vmem:[%s0 + $0x20] sm:$0xf]
    %v45 = vld [vmem:[%s0 + $0x24] sm:$0xf]
    %v46 = vld [vmem:[%s0 + $0x28] sm:$0xf]
    %v47 = vld [vmem:[%s0 + $0x2c] sm:$0xf]
    %v48 = vld [vmem:[%s0 + $0x30] sm:$0xf]
    %v49 = vld [vmem:[%s0 + $0x34] sm:$0xf]
    %v50 = vld [vmem:[%s0 + $0x38] sm:$0xf]
    %v51 = vld [vmem:[%s0 + $0x3c] sm:$0xf]
    %v52 = vld [vmem:[%s1] sm:$0xf]
    %v53 = vld [vmem:[%s1 + $0x4] sm:$0xf]
    %v54 = vld [vmem:[%s1 + $0x8] sm:$0xf]
    %v55 = vld [vmem:[%s1 + $0xc] sm:$0xf]
    %v56 = vld [vmem:[%s1 + $0x10] sm:$0xf]
    %v57 = vld [vmem:[%s1 + $0x14] sm:$0xf]
    %v58 = vld [vmem:[%s1 + $0x18] sm:$0xf]
    %v59 = vld [vmem:[%s1 + $0x1c] sm:$0xf]
    %v60 = vld [vmem:[%s1 + $0x20] sm:$0xf]
    %v61 = vld [vmem:[%s1 + $0x24] sm:$0xf]
    %v62 = vld [vmem:[%s1 + $0x28] sm:$0xf]
    %v63 = vld [vmem:[%s1 + $0x2c] sm:$0xf]
    %v64 = vld [vmem:[%s1 + $0x30] sm:$0xf]
    %v65 = vld [vmem:[%s1 + $0x34] sm:$0xf]
    %v66 = vld [vmem:[%s1 + $0x38] sm:$0xf]
    %v67 = vld [vmem:[%s1 + $0x3c] sm:$0xf]
    %v68 = vld [vmem:[%s2] sm:$0x1]
    %v70 = vperm.slane %v68, 0
    %v88 = vunpack.c.l.b16 %v36
    %v89 = vunpack.c.l.b16 %v37
    %v90 = vunpack.c.l.b16 %v38
    %v91 = vunpack.c.l.b16 %v39
    %v92 = vunpack.c.l.b16 %v40
    %v93 = vunpack.c.l.b16 %v41
    %v94 = vunpack.c.l.b16 %v42
    %v95 = vunpack.c.l.b16 %v43
    %v96 = vunpack.c.l.b16 %v44
    %v97 = vunpack.c.l.b16 %v45
    %v98 = vunpack.c.l.b16 %v46
    %v99 = vunpack.c.l.b16 %v47
    %v100 = vunpack.c.l.b16 %v48
    %v101 = vunpack.c.l.b16 %v49
    %v102 = vunpack.c.l.b16 %v50
    %v103 = vunpack.c.l.b16 %v51
    %v104 = vpack.c.b16 %v89, %v88
    %v105 = vpack.c.b16 %v91, %v90
    %v106 = vpack.c.b16 %v93, %v92
    %v107 = vpack.c.b16 %v95, %v94
    %v108 = vpack.c.b16 %v97, %v96
    %v109 = vpack.c.b16 %v99, %v98
    %v110 = vpack.c.b16 %v101, %v100
    %v111 = vpack.c.b16 %v103, %v102
    %v136 = vunpack.c.l.b16 %v52
    %v137 = vunpack.c.l.b16 %v53
    %v138 = vunpack.c.l.b16 %v54
    %v139 = vunpack.c.l.b16 %v55
    %v140 = vunpack.c.l.b16 %v56
    %v141 = vunpack.c.l.b16 %v57
    %v142 = vunpack.c.l.b16 %v58
    %v143 = vunpack.c.l.b16 %v59
    %v144 = vunpack.c.l.b16 %v60
    %v145 = vunpack.c.l.b16 %v61
    %v146 = vunpack.c.l.b16 %v62
    %v147 = vunpack.c.l.b16 %v63
    %v148 = vunpack.c.l.b16 %v64
    %v149 = vunpack.c.l.b16 %v65
    %v150 = vunpack.c.l.b16 %v66
    %v151 = vunpack.c.l.b16 %v67
    %v152 = vpack.c.b16 %v137, %v136
    %v153 = vpack.c.b16 %v139, %v138
    %v154 = vpack.c.b16 %v141, %v140
    %v155 = vpack.c.b16 %v143, %v142
    %v156 = vpack.c.b16 %v145, %v144
    %v157 = vpack.c.b16 %v147, %v146
    %v158 = vpack.c.b16 %v149, %v148
    %v159 = vpack.c.b16 %v151, %v150
    %168 = vmatpush.bf16.msra.mxu0 %v159
    %169 = vmatpush.bf16.msra.mxu0 %v158
    %170 = vmatpush.bf16.msra.mxu0 %v157
    %171 = vmatpush.bf16.msra.mxu0 %v156
    %172 = vmatpush.bf16.msra.mxu0 %v155
    %173 = vmatpush.bf16.msra.mxu0 %v154
    %174 = vmatpush.bf16.msra.mxu0 %v153
    %175 = vmatpush.bf16.msra.mxu0 %v152
    %176 = vmatmul.bf16.gmra.mxu0 %v104
    %v177 = vpop.f32.mrf.mxu0
    %v178 = vadd.f32 %v70, %v177
    %v179 = vpop.f32.mrf.mxu0
    %v180 = vadd.f32 %v70, %v179
    %181 = vmatmul.bf16.gmra.mxu0 %v105
    %v182 = vpop.f32.mrf.mxu0
    %v183 = vadd.f32 %v70, %v182
    %v184 = vpop.f32.mrf.mxu0
    %v185 = vadd.f32 %v70, %v184
    %186 = vmatmul.bf16.gmra.mxu0 %v106
    %v187 = vpop.f32.mrf.mxu0
    %v188 = vadd.f32 %v70, %v187
    %v189 = vpop.f32.mrf.mxu0
    %v190 = vadd.f32 %v70, %v189
    %191 = vmatmul.bf16.gmra.mxu0 %v107
    %v192 = vpop.f32.mrf.mxu0
    %v193 = vadd.f32 %v70, %v192
    %v194 = vpop.f32.mrf.mxu0
    %v195 = vadd.f32 %v70, %v194
    %196 = vmatmul.bf16.gmra.mxu0 %v108
    %v197 = vpop.f32.mrf.mxu0
    %v198 = vadd.f32 %v70, %v197
    %v199 = vpop.f32.mrf.mxu0
    %v200 = vadd.f32 %v70, %v199
    %201 = vmatmul.bf16.gmra.mxu0 %v109
    %v202 = vpop.f32.mrf.mxu0
    %v203 = vadd.f32 %v70, %v202
    %v204 = vpop.f32.mrf.mxu0
    %v205 = vadd.f32 %v70, %v204
    %206 = vmatmul.bf16.gmra.mxu0 %v110
    %v207 = vpop.f32.mrf.mxu0
    %v208 = vadd.f32 %v70, %v207
    %v209 = vpop.f32.mrf.mxu0
    %v210 = vadd.f32 %v70, %v209
    %211 = vmatmul.bf16.gmra.mxu0 %v111
    %v212 = vpop.f32.mrf.mxu0
    %v213 = vadd.f32 %v70, %v212
    %v214 = vpop.f32.mrf.mxu0
    %v215 = vadd.f32 %v70, %v214
    %216 = vdwg.mxu0
    %v217 = vmax.f32 %v178, 0.0
    %v218 = vmax.f32 %v180, 0.0
    %v219 = vmax.f32 %v183, 0.0
    %v220 = vmax.f32 %v185, 0.0
    %v221 = vmax.f32 %v188, 0.0
    %v222 = vmax.f32 %v190, 0.0
    %v223 = vmax.f32 %v193, 0.0
    %v224 = vmax.f32 %v195, 0.0
    %v225 = vmax.f32 %v198, 0.0
    %v226 = vmax.f32 %v200, 0.0
    %v227 = vmax.f32 %v203, 0.0
    %v228 = vmax.f32 %v205, 0.0
    %v229 = vmax.f32 %v208, 0.0
    %v230 = vmax.f32 %v210, 0.0
    %v231 = vmax.f32 %v213, 0.0
    %v232 = vmax.f32 %v215, 0.0
    %v233 = vpack.c.bf16 %v218, %v217
    %v234 = vpack.c.bf16 %v220, %v219
    %v235 = vpack.c.bf16 %v222, %v221
    %v236 = vpack.c.bf16 %v224, %v223
    %v237 = vpack.c.bf16 %v226, %v225
    %v238 = vpack.c.bf16 %v228, %v227
    %v239 = vpack.c.bf16 %v230, %v229
    %v240 = vpack.c.bf16 %v232, %v231
    %v241 = vld [vmem:[#allocation2] sm:$0xf]
    %v242 = vld [vmem:[#allocation2 + $0x4] sm:$0xf]
    %v243 = vld [vmem:[#allocation2 + $0x8] sm:$0xf]
    %v244 = vld [vmem:[#allocation2 + $0xc] sm:$0xf]
    %v245 = vld [vmem:[#allocation2 + $0x10] sm:$0xf]
    %v246 = vld [vmem:[#allocation2 + $0x14] sm:$0xf]
    %v247 = vld [vmem:[#allocation2 + $0x18] sm:$0xf]
    %v248 = vld [vmem:[#allocation2 + $0x1c] sm:$0xf]
    %v249 = vld [vmem:[#allocation2 + $0x20] sm:$0xf]
    %v250 = vld [vmem:[#allocation2 + $0x24] sm:$0xf]
    %v251 = vld [vmem:[#allocation2 + $0x28] sm:$0xf]
    %v252 = vld [vmem:[#allocation2 + $0x2c] sm:$0xf]
    %v253 = vld [vmem:[#allocation2 + $0x30] sm:$0xf]
    %v254 = vld [vmem:[#allocation2 + $0x34] sm:$0xf]
    %v255 = vld [vmem:[#allocation2 + $0x38] sm:$0xf]
    %v256 = vld [vmem:[#allocation2 + $0x3c] sm:$0xf]
    %v257 = vld [vmem:[%s4] sm:$0x1]
    %v259 = vperm.slane %v257, 0
    %v277 = vunpack.c.l.b16 %v241
    %v278 = vunpack.c.l.b16 %v242
    %v279 = vunpack.c.l.b16 %v243
    %v280 = vunpack.c.l.b16 %v244
    %v281 = vunpack.c.l.b16 %v245
    %v282 = vunpack.c.l.b16 %v246
    %v283 = vunpack.c.l.b16 %v247
    %v284 = vunpack.c.l.b16 %v248
    %v285 = vunpack.c.l.b16 %v249
    %v286 = vunpack.c.l.b16 %v250
    %v287 = vunpack.c.l.b16 %v251
    %v288 = vunpack.c.l.b16 %v252
    %v289 = vunpack.c.l.b16 %v253
    %v290 = vunpack.c.l.b16 %v254
    %v291 = vunpack.c.l.b16 %v255
    %v292 = vunpack.c.l.b16 %v256
    %v293 = vpack.c.b16 %v278, %v277
    %v294 = vpack.c.b16 %v280, %v279
    %v295 = vpack.c.b16 %v282, %v281
    %v296 = vpack.c.b16 %v284, %v283
    %v297 = vpack.c.b16 %v286, %v285
    %v298 = vpack.c.b16 %v288, %v287
    %v299 = vpack.c.b16 %v290, %v289
    %v300 = vpack.c.b16 %v292, %v291
    %309 = vmatpush.bf16.msra.mxu0 %v300
    %310 = vmatpush.bf16.msra.mxu0 %v299
    %311 = vmatpush.bf16.msra.mxu0 %v298
    %312 = vmatpush.bf16.msra.mxu0 %v297
    %313 = vmatpush.bf16.msra.mxu0 %v296
    %314 = vmatpush.bf16.msra.mxu0 %v295
    %315 = vmatpush.bf16.msra.mxu0 %v294
    %316 = vmatpush.bf16.msra.mxu0 %v293
    %317 = vmatmul.bf16.gmra.mxu0 %v233
    %v318 = vpop.f32.mrf.mxu0
    %v319 = vadd.f32 %v259, %v318
    %v320 = vpop.f32.mrf.mxu0
    %v321 = vadd.f32 %v259, %v320
    %322 = vmatmul.bf16.gmra.mxu0 %v234
    %v323 = vpop.f32.mrf.mxu0
    %v324 = vadd.f32 %v259, %v323
    %v325 = vpop.f32.mrf.mxu0
    %v326 = vadd.f32 %v259, %v325
    %327 = vmatmul.bf16.gmra.mxu0 %v235
    %v328 = vpop.f32.mrf.mxu0
    %v329 = vadd.f32 %v259, %v328
    %v330 = vpop.f32.mrf.mxu0
    %v331 = vadd.f32 %v259, %v330
    %332 = vmatmul.bf16.gmra.mxu0 %v236
    %v333 = vpop.f32.mrf.mxu0
    %v334 = vadd.f32 %v259, %v333
    %v335 = vpop.f32.mrf.mxu0
    %v336 = vadd.f32 %v259, %v335
    %337 = vmatmul.bf16.gmra.mxu0 %v237
    %v338 = vpop.f32.mrf.mxu0
    %v339 = vadd.f32 %v259, %v338
    %v340 = vpop.f32.mrf.mxu0
    %v341 = vadd.f32 %v259, %v340
    %342 = vmatmul.bf16.gmra.mxu0 %v238
    %v343 = vpop.f32.mrf.mxu0
    %v344 = vadd.f32 %v259, %v343
    %v345 = vpop.f32.mrf.mxu0
    %v346 = vadd.f32 %v259, %v345
    %347 = vmatmul.bf16.gmra.mxu0 %v239
    %v348 = vpop.f32.mrf.mxu0
    %v349 = vadd.f32 %v259, %v348
    %v350 = vpop.f32.mrf.mxu0
    %v351 = vadd.f32 %v259, %v350
    %352 = vmatmul.bf16.gmra.mxu0 %v240
    %v353 = vpop.f32.mrf.mxu0
    %v354 = vadd.f32 %v259, %v353
    %v355 = vpop.f32.mrf.mxu0
    %v356 = vadd.f32 %v259, %v355
    %357 = vdwg.mxu0
    %358 = vst [vmem:[%s5] sm:$0xff] %v319
    %359 = vst [vmem:[%s5 + $0x8] sm:$0xff] %v321
    %360 = vst [vmem:[%s5 + $0x10] sm:$0xff] %v324
    %361 = vst [vmem:[%s5 + $0x18] sm:$0xff] %v326
    %362 = vst [vmem:[%s5 + $0x20] sm:$0xff] %v329
    %363 = vst [vmem:[%s5 + $0x28] sm:$0xff] %v331
    %364 = vst [vmem:[%s5 + $0x30] sm:$0xff] %v334
    %365 = vst [vmem:[%s5 + $0x38] sm:$0xff] %v336
    %366 = vst [vmem:[%s5 + $0x40] sm:$0xff] %v339
    %367 = vst [vmem:[%s5 + $0x48] sm:$0xff] %v341
    %368 = vst [vmem:[%s5 + $0x50] sm:$0xff] %v344
    %369 = vst [vmem:[%s5 + $0x58] sm:$0xff] %v346
    %370 = vst [vmem:[%s5 + $0x60] sm:$0xff] %v349
    %371 = vst [vmem:[%s5 + $0x68] sm:$0xff] %v351
    %372 = vst [vmem:[%s5 + $0x70] sm:$0xff] %v354
    %373 = vst [vmem:[%s5 + $0x78] sm:$0xff] %v356
    // Predicated region
    $region26: #{_ffn_forward.1} parent=1 // pred_check
      _
    $region27: #{_ffn_forward.1} parent=1 // pred_check_branch
      %375 = sbr.rel (0) target = $region29
    $region28: #{_ffn_forward.1} parent=1 // pred_region
      _
    $region29: #{_ffn_forward.1} parent=1 // pred_fallthru
      _
    // Predicated region
    $region30: #{_ffn_forward.1} parent=1 // pred_check
      _
    $region31: #{_ffn_forward.1} parent=1 // pred_check_branch
      %377 = sbr.rel (0) target = $region33
    $region32: #{_ffn_forward.1} parent=1 // pred_region
      _
    $region33: #{_ffn_forward.1} parent=1 // pred_fallthru
      _
    %378 = vsyncpa [#allocation3], 1

</llo_original>
